<compile_context>
chip_gen: v6e
topology: v6e:2x2x1
jax: 0.10.0
libtpu: 0.0.40
codegen_flags: <defaults>
</compile_context>

<pallas_src>
import functools

import jax
import jax.numpy as jnp
from jax.experimental import pallas as pl
from jax.experimental.pallas import tpu as pltpu


def _round_up(x, m):
    return (x + m - 1) // m * m


# ---------------------------------------------------------------------------
# Pass 1: GroupNorm statistics (per-batch, per-channel sum and sum of squares)
# ---------------------------------------------------------------------------
def _gn_stats_kernel(x_ref, s_ref):
    @pl.when(pl.program_id(1) == 0)
    def _():
        s_ref[...] = jnp.zeros_like(s_ref)

    x = x_ref[0].astype(jnp.float32)                    # (C, Lt)
    s1 = jnp.sum(x, axis=1, keepdims=True)              # (C, 1)
    s2 = jnp.sum(x * x, axis=1, keepdims=True)          # (C, 1)
    s_ref[0] += jnp.concatenate([s1, s2], axis=1)       # (C, 2) accumulator


# ---------------------------------------------------------------------------
# Pass 2: normalize + SiLU + 3x3 conv (+ optional conditioning) on one H-band
# ---------------------------------------------------------------------------
def _conv_block_kernel(W, tile_h, Lp_pad, mode, *refs):
    if mode == "scale_shift":
        (x_ref, top_ref, bot_ref, ab_ref, w9_ref, cb_ref, cm_ref,
         scale_ref, shift_ref, o_ref) = refs
    elif mode == "add":
        (x_ref, top_ref, bot_ref, ab_ref, w9_ref, cb_ref, cm_ref,
         shift_ref, o_ref) = refs
        scale_ref = None
    else:
        (x_ref, top_ref, bot_ref, ab_ref, w9_ref, cb_ref, cm_ref, o_ref) = refs
        scale_ref = shift_ref = None

    C = x_ref.shape[1]
    Lt = tile_h * W                     # interior band lanes (multiple of 128)
    Lp = Lt + 2 * W                     # band + 1-row halo on each side
    Wp = top_ref.shape[-1]              # halo rows padded to a multiple of 128

    # Folded GroupNorm affine (a = gamma*rstd, b = beta - mean*a), per channel.
    a = ab_ref[0, :, 0:1]               # (C, 1) f32
    b = ab_ref[0, :, 1:2]               # (C, 1) f32

    # --- assemble padded band [top row | band | bottom row | zeros] ----------
    # Only 128-aligned concats, pltpu.roll over a 128-multiple lane length and
    # elementwise adds of disjoint-support pieces (no unaligned lane ops).
    band = x_ref[0]                                                  # (C, Lt) bf16
    band = jnp.concatenate(
        [band, jnp.zeros((C, Lp_pad - Lt), jnp.bfloat16)], axis=1)   # (C, Lp_pad)
    band = pltpu.roll(band, W, axis=1)                               # band -> [W, W+Lt)

    top = top_ref[0, 0]                                              # (C, Wp) bf16
    bot = bot_ref[0, 0]
    if Lp_pad > Wp:
        zpad = jnp.zeros((C, Lp_pad - Wp), jnp.bfloat16)
        top = jnp.concatenate([top, zpad], axis=1)
        bot = jnp.concatenate([bot, zpad], axis=1)
    bot = pltpu.roll(bot, W + Lt, axis=1)                            # bot -> [W+Lt, Lp)

    xp = (band + top + bot).astype(jnp.float32)                      # (C, Lp_pad)

    # --- GroupNorm (folded affine) + SiLU, f32 elementwise --------------------
    xn = xp * a + b
    yp = (xn * jax.nn.sigmoid(xn)).astype(jnp.bfloat16)              # (C, Lp_pad)

    # Zero the halo columns in ACTIVATION space at the global image top/bottom so
    # the conv sees true zero padding there; interior band boundaries keep the
    # real neighbor-row activations that arrived via the halo inputs.
    band_i = pl.program_id(1)
    nbands = pl.num_programs(1)
    lane = jax.lax.broadcasted_iota(jnp.int32, (1, Lp_pad), 1)
    keep = jnp.logical_and(
        jnp.logical_or(band_i > 0, lane >= W),
        jnp.logical_or(band_i < nbands - 1, lane < W + Lt))
    yp = jnp.where(keep, yp, jnp.zeros_like(yp))

    # Column-edge pre-masks (constant input): yl feeds the dx=-1 taps (source
    # column W-1 is never valid there), yr feeds the dx=+1 taps (source col 0).
    yl = yp * cm_ref[0:1, :]
    yr = yp * cm_ref[1:2, :]

    # --- 3x3 conv: 9 accumulated (Cout, C) x (C, Lp_pad) bf16 matmuls -> f32 --
    # Only one rolled tap is live at a time (no (9C, L) im2col); the extra +W in
    # the shift makes the matmul columns line up with the interior band directly,
    # so the final slice [:, :Lt] is lane-aligned.
    acc = None
    tap = 0
    for dy in (-1, 0, 1):
        for dx in (-1, 0, 1):
            src = yl if dx == -1 else (yr if dx == 1 else yp)
            s = W + dy * W + dx
            shifted = pltpu.roll(src, (-s) % Lp_pad, axis=1)
            contrib = jnp.dot(w9_ref[tap], shifted,
                              preferred_element_type=jnp.float32)
            acc = contrib if acc is None else acc + contrib
            tap += 1

    out = acc[:, :Lt] + cb_ref[...]                                  # (Cout, Lt)

    if mode == "scale_shift":
        out = out * (scale_ref[0] + 1.0) + shift_ref[0]
    elif mode == "add":
        out = out + shift_ref[0]

    o_ref[0] = out.astype(o_ref.dtype)                               # lane-dense store


# ---------------------------------------------------------------------------
# Wrapper
# ---------------------------------------------------------------------------
def _const_spec(arr):
    """Single-buffered BlockSpec for an operand whose block never changes."""
    nd = arr.ndim
    return pl.BlockSpec(arr.shape, lambda b, i, _nd=nd: (0,) * _nd,
                        pipeline_mode=pl.Buffered(1))


def _vmem_capacity_bytes():
    try:
        return int(pltpu.get_tpu_info().vmem_capacity_bytes)
    except Exception:
        return 64 * 1024 * 1024        # conservative: v7x per-TensorCore VMEM


def _step_bytes(C, Cout, W, tile_h, mode, out_itemsize):
    """Rough per-grid-step VMEM footprint of the main kernel."""
    Lt = tile_h * W
    Lp_pad = _round_up(Lt + 2 * W, 128)
    Wp = _round_up(W, 128)
    dbl = 2 * (C * Lt * 2 + 2 * C * Wp * 2 + C * 2 * 4 + Cout * Lt * out_itemsize)
    if mode == "scale_shift":
        dbl += 2 * 2 * Cout * 4
    elif mode == "add":
        dbl += 2 * Cout * 4
    consts = 9 * Cout * C * 2 + Cout * 4 + 2 * Lp_pad * 2
    temps = (C * Lp_pad * (4 + 4 * 2)          # f32 padded band + bf16 yp/yl/yr/tap
             + Cout * Lp_pad * 4               # f32 accumulator
             + Cout * Lt * (4 + out_itemsize))
    return dbl + consts + temps


def _pick_tile_h(H, W, max_lanes, budget, est_fn):
    """Largest H-band (divisor of H, lane-aligned) whose footprint fits the budget."""
    cands = [th for th in range(1, H + 1)
             if H % th == 0 and ((th * W) % 128 == 0 or th == H)]
    best = None
    for th in cands:                           # ascending -> keeps the largest fit
        if th * W <= max_lanes and est_fn(th) <= budget:
            best = th
    if best is None:
        for th in cands:                       # ignore lane target, honor VMEM
            if est_fn(th) <= budget:
                best = th
                break
    if best is None:
        best = cands[0]
    return best


def conv2d_block(x_nchw, gn_weight, gn_bias, conv_w_oihw, conv_b, *,
                 groups, eps=1e-5, t=None, shift_scale=True,
                 max_tile_lanes=2048, out_dtype=None):
    """Forward pass of Conv2DBlock.  x_nchw: (B, C, H, W) -> (B, Cout, H, W)."""
    B, C, H, W = x_nchw.shape
    Cout = conv_w_oihw.shape[0]
    assert C % groups == 0
    cpg = C // groups
    HW = H * W
    out_dtype = x_nchw.dtype if out_dtype is None else out_dtype
    out_itemsize = jnp.dtype(out_dtype).itemsize

    if t is None:
        mode = "none"
    elif shift_scale:
        mode = "scale_shift"
    else:
        mode = "add"

    # ---- H-band tile selection + VMEM budget --------------------------------
    cap = _vmem_capacity_bytes()
    est = lambda th: _step_bytes(C, Cout, W, th, mode, out_itemsize)
    tile_h = _pick_tile_h(H, W, max_tile_lanes, int(0.45 * cap), est)
    n_bands = H // tile_h
    Lt = tile_h * W
    Lp = Lt + 2 * W
    Lp_pad = _round_up(Lp, 128)
    Wp = _round_up(W, 128)
    need = est(tile_h)
    vmem_limit = int(min(0.8 * cap, max(2 * need, 32 * 1024 * 1024)))

    # ---- glue: reshape only, bf16 HBM stream (no big transposes of x) -------
    x_flat = x_nchw.reshape(B, C, HW).astype(jnp.bfloat16)

    # ---- pass 1: per-(batch, channel) sum / sum-of-squares ------------------
    stats = pl.pallas_call(
        _gn_stats_kernel,
        out_shape=jax.ShapeDtypeStruct((B, C, 2), jnp.float32),
        grid=(B, n_bands),
        in_specs=[pl.BlockSpec((1, C, Lt), lambda b, i: (b, 0, i))],
        out_specs=pl.BlockSpec((1, C, 2), lambda b, i: (b, 0, 0)),
        compiler_params=pltpu.CompilerParams(
            dimension_semantics=("parallel", "arbitrary"),
            vmem_limit_bytes=vmem_limit),
    )(x_flat)

    # tiny (B, C)-sized epilogue in XLA: group mean/var -> folded per-channel affine
    n = float(cpg * HW)
    gsum = stats.reshape(B, groups, cpg, 2).sum(axis=2)       # (B, G, 2)
    mean = gsum[..., 0] / n
    var = gsum[..., 1] / n - mean * mean                      # biased (matches torch)
    rstd = jax.lax.rsqrt(var + eps)
    mean_c = jnp.repeat(mean, cpg, axis=1)                    # (B, C)
    rstd_c = jnp.repeat(rstd, cpg, axis=1)
    a = gn_weight[None, :].astype(jnp.float32) * rstd_c
    bcoef = gn_bias[None, :].astype(jnp.float32) - mean_c * a
    ab = jnp.stack([a, bcoef], axis=-1)                       # (B, C, 2) f32

    # halo rows: band i's top halo = last row of band i-1, bottom = first of i+1
    xb5 = x_flat.reshape(B, C, n_bands, tile_h, W)
    zrow = jnp.zeros((B, C, 1, W), x_flat.dtype)
    top_rows = jnp.concatenate([zrow, xb5[:, :, :-1, tile_h - 1, :]], axis=2)
    bot_rows = jnp.concatenate([xb5[:, :, 1:, 0, :], zrow], axis=2)
    top_rows = jnp.transpose(top_rows, (0, 2, 1, 3))          # (B, n_bands, C, W)
    bot_rows = jnp.transpose(bot_rows, (0, 2, 1, 3))
    if Wp > W:                                                # pad halo rows to 128 lanes
        pad = [(0, 0), (0, 0), (0, 0), (0, Wp - W)]
        top_rows = jnp.pad(top_rows, pad)
        bot_rows = jnp.pad(bot_rows, pad)

    # conv weight OIHW -> (9, Cout, C), tap-major, bf16 for the MXU
    w9 = jnp.transpose(conv_w_oihw, (2, 3, 0, 1)).reshape(9, Cout, C).astype(jnp.bfloat16)
    cb = conv_b.reshape(Cout, 1).astype(jnp.float32)

    # column-edge pre-masks over the padded band (constant; no per-step idiv)
    pos = jnp.arange(Lp_pad)
    col = pos % W
    in_band = pos < Lp
    mask_l = ((col != (W - 1)) & in_band).astype(jnp.bfloat16)   # for dx = -1 taps
    mask_r = ((col != 0) & in_band).astype(jnp.bfloat16)         # for dx = +1 taps
    colmask = jnp.stack([mask_l, mask_r], axis=0)                # (2, Lp_pad)

    in_specs = [
        pl.BlockSpec((1, C, Lt), lambda b, i: (b, 0, i)),        # x band
        pl.BlockSpec((1, 1, C, Wp), lambda b, i: (b, i, 0, 0)),  # top halo row
        pl.BlockSpec((1, 1, C, Wp), lambda b, i: (b, i, 0, 0)),  # bottom halo row
        pl.BlockSpec((1, C, 2), lambda b, i: (b, 0, 0)),         # folded GN affine
        _const_spec(w9), _const_spec(cb), _const_spec(colmask),
    ]
    args = [x_flat, top_rows, bot_rows, ab, w9, cb, colmask]

    if mode == "scale_shift":
        s, sh = t
        scale = s.reshape(B, Cout, 1).astype(jnp.float32)
        shift = sh.reshape(B, Cout, 1).astype(jnp.float32)
        in_specs += [pl.BlockSpec((1, Cout, 1), lambda b, i: (b, 0, 0)),
                     pl.BlockSpec((1, Cout, 1), lambda b, i: (b, 0, 0))]
        args += [scale, shift]
    elif mode == "add":
        shift = t.reshape(B, Cout, 1).astype(jnp.float32)
        in_specs += [pl.BlockSpec((1, Cout, 1), lambda b, i: (b, 0, 0))]
        args += [shift]

    kernel = functools.partial(_conv_block_kernel, W, tile_h, Lp_pad, mode)

    cost = pl.CostEstimate(
        flops=2 * B * Cout * 9 * C * HW,
        transcendentals=B * C * HW,
        bytes_accessed=int(B * C * HW * 2 + B * Cout * HW * out_itemsize
                           + 9 * Cout * C * 2 + B * C * 2 * 4))

    out = pl.pallas_call(
        kernel,
        out_shape=jax.ShapeDtypeStruct((B, Cout, HW), out_dtype),
        grid=(B, n_bands),
        in_specs=in_specs,
        out_specs=pl.BlockSpec((1, Cout, Lt), lambda b, i: (b, 0, i)),
        compiler_params=pltpu.CompilerParams(
            dimension_semantics=("parallel", "parallel"),
            vmem_limit_bytes=vmem_limit),
        cost_estimate=cost,
    )(*args)

    return out.reshape(B, Cout, H, W)


# ---------------------------------------------------------------------------
# Pure-JAX reference (matches the PyTorch module)
# ---------------------------------------------------------------------------
def ref_forward(x_nchw, gn_w, gn_b, w_oihw, b, *, groups, eps=1e-5, t=None,
                shift_scale=True):
    B, C, H, W = x_nchw.shape
    xg = x_nchw.reshape(B, groups, -1)
    mean = xg.mean(axis=2, keepdims=True)
    var = xg.var(axis=2, keepdims=True)
    xn = ((xg - mean) / jnp.sqrt(var + eps)).reshape(B, C, H, W)
    xn = xn * gn_w[None, :, None, None] + gn_b[None, :, None, None]
    y = xn * jax.nn.sigmoid(xn)
    out = jax.lax.conv_general_dilated(
        y, w_oihw, window_strides=(1, 1), padding="SAME",
        dimension_numbers=("NCHW", "OIHW", "NCHW")) + b[None, :, None, None]
    if t is not None:
        if shift_scale:
            s, sh = t
            out = out * (s.reshape(B, -1, 1, 1) + 1.0) + sh.reshape(B, -1, 1, 1)
        else:
            out = out + t.reshape(B, -1, 1, 1)
    return out


if __name__ == "__main__":
    key = jax.random.PRNGKey(0)
    kx, kg, kb, kw, kc, ks, ksh, kt = jax.random.split(key, 8)

    B, C, H, W = 2, 8, 16, 16
    Cout, groups = 16, 4

    x = jax.random.normal(kx, (B, C, H, W), jnp.float32)
    gn_w = 1.0 + 0.1 * jax.random.normal(kg, (C,), jnp.float32)
    gn_b = 0.1 * jax.random.normal(kb, (C,), jnp.float32)
    conv_w = 0.1 * jax.random.normal(kw, (Cout, C, 3, 3), jnp.float32)
    conv_b = 0.1 * jax.random.normal(kc, (Cout,), jnp.float32)
    scale = 0.1 * jax.random.normal(ks, (B, Cout, 1, 1), jnp.float32)
    shift = 0.1 * jax.random.normal(ksh, (B, Cout, 1, 1), jnp.float32)
    t_add = 0.1 * jax.random.normal(kt, (B, Cout), jnp.float32)

    # Tolerance sized for bf16 HBM streams + bf16 MXU inputs with f32 accumulation.
    TOL = dict(atol=3e-2, rtol=3e-2)

    # t=None path (dedicated kernel variant, no conditioning epilogue)
    out = conv2d_block(x, gn_w, gn_b, conv_w, conv_b, groups=groups)
    jax.block_until_ready(out)
    ref = ref_forward(x, gn_w, gn_b, conv_w, conv_b, groups=groups)
    assert out.shape == (B, Cout, H, W)
    assert jnp.allclose(out, ref, **TOL), float(jnp.max(jnp.abs(out - ref)))

    # shift_scale=True path with t = (scale, shift)
    out_t = conv2d_block(x, gn_w, gn_b, conv_w, conv_b, groups=groups,
                         t=(scale, shift))
    jax.block_until_ready(out_t)
    ref_t = ref_forward(x, gn_w, gn_b, conv_w, conv_b, groups=groups,
                        t=(scale, shift))
    assert jnp.allclose(out_t, ref_t, **TOL), float(jnp.max(jnp.abs(out_t - ref_t)))

    # shift_scale=False path: x + t[..., None, None]
    out_a = conv2d_block(x, gn_w, gn_b, conv_w, conv_b, groups=groups,
                         t=t_add, shift_scale=False)
    jax.block_until_ready(out_a)
    ref_a = ref_forward(x, gn_w, gn_b, conv_w, conv_b, groups=groups,
                        t=t_add, shift_scale=False)
    assert jnp.allclose(out_a, ref_a, **TOL), float(jnp.max(jnp.abs(out_a - ref_a)))

    # Force multiple H-bands (exercises the halo path even at this small size).
    out_band = conv2d_block(x, gn_w, gn_b, conv_w, conv_b, groups=groups,
                            t=(scale, shift), max_tile_lanes=128)
    jax.block_until_ready(out_band)
    assert jnp.allclose(out_band, ref_t, **TOL), \
        float(jnp.max(jnp.abs(out_band - ref_t)))

    print("KERNEL_OK")
</pallas_src>

<mosaic_0001>
module attributes {stable_mosaic.version = 11 : i64} {
  func.func @_gn_stats_kernel(%arg0: i32, %arg1: i32, %arg2: memref<1x8x256xbf16, #tpu.memory_space<vmem>>, %arg3: memref<1x8x2xf32, #tpu.memory_space<vmem>>) attributes {dimension_semantics = [#tpu.dimension_semantics<parallel>, #tpu.dimension_semantics<arbitrary>], iteration_bounds = array<i64: 2, 1>, scalar_prefetch = 0 : i64, scratch_operands = 0 : i64, tpu.core_type = #tpu.core_type<tc>, window_params = [{transform_indices = @transform_0, window_bounds = array<i64: 1, 8, 256>}, {transform_indices = @transform_1, window_bounds = array<i64: 1, 8, 2>}]} {
    %c0_i32 = arith.constant 0 : i32
    %0 = arith.cmpi eq, %arg1, %c0_i32 : i32
    %1 = arith.extui %0 : i1 to i32
    %c0_i32_0 = arith.constant 0 : i32
    %2 = arith.cmpi ne, %1, %c0_i32_0 : i32
    scf.if %2 {
      %cst_10 = arith.constant 0.000000e+00 : f32
      %18 = vector.broadcast %cst_10 : f32 to vector<1x8x2xf32>
      %c0_11 = arith.constant 0 : index
      %c0_12 = arith.constant 0 : index
      %c0_13 = arith.constant 0 : index
      %19 = vector.load %arg3[%c0_11, %c0_12, %c0_13] : memref<1x8x2xf32, #tpu.memory_space<vmem>>, vector<1x8x2xf32>
      tpu.vector_store %arg3[%c0_11, %c0_12, %c0_13], %18 {strides = array<i32>} : memref<1x8x2xf32, #tpu.memory_space<vmem>>, vector<1x8x2xf32>,
    } else {
    }
    %c0 = arith.constant 0 : index
    %c0_1 = arith.constant 0 : index
    %c0_2 = arith.constant 0 : index
    %3 = vector.load %arg2[%c0, %c0_1, %c0_2] : memref<1x8x256xbf16, #tpu.memory_space<vmem>>, vector<1x8x256xbf16>
    %4 = vector.shape_cast %3 : vector<1x8x256xbf16> to vector<8x256xbf16>
    %5 = arith.extf %4 : vector<8x256xbf16> to vector<8x256xf32>
    %cst = arith.constant dense<0.000000e+00> : vector<8xf32>
    %6 = vector.multi_reduction <add>, %5, %cst [1] : vector<8x256xf32> to vector<8xf32>
    %7 = vector.shape_cast %6 : vector<8xf32> to vector<8x1xf32>
    %8 = arith.mulf %5, %5 : vector<8x256xf32>
    %cst_3 = arith.constant dense<0.000000e+00> : vector<8xf32>
    %9 = vector.multi_reduction <add>, %8, %cst_3 [1] : vector<8x256xf32> to vector<8xf32>
    %10 = vector.shape_cast %9 : vector<8xf32> to vector<8x1xf32>
    %c0_4 = arith.constant 0 : index
    %c0_5 = arith.constant 0 : index
    %c0_6 = arith.constant 0 : index
    %11 = vector.load %arg3[%c0_4, %c0_5, %c0_6] : memref<1x8x2xf32, #tpu.memory_space<vmem>>, vector<1x8x2xf32>
    %12 = vector.shape_cast %11 : vector<1x8x2xf32> to vector<8x2xf32>
    %13 = tpu.concatenate %7, %10 in 1 : vector<8x1xf32>, vector<8x1xf32> -> vector<8x2xf32>
    %14 = arith.addf %12, %13 : vector<8x2xf32>
    %c0_7 = arith.constant 0 : index
    %c0_8 = arith.constant 0 : index
    %c0_9 = arith.constant 0 : index
    %15 = vector.load %arg3[%c0_7, %c0_8, %c0_9] : memref<1x8x2xf32, #tpu.memory_space<vmem>>, vector<1x8x2xf32>
    %16 = vector.shape_cast %15 : vector<1x8x2xf32> to vector<8x2xf32>
    %17 = vector.shape_cast %14 : vector<8x2xf32> to vector<1x8x2xf32>
    tpu.vector_store %arg3[%c0_7, %c0_8, %c0_9], %17 {strides = array<i32>} : memref<1x8x2xf32, #tpu.memory_space<vmem>>, vector<1x8x2xf32>,
    return
  }
  func.func @transform_0(%arg0: i32, %arg1: i32) -> (i32, i32, i32) {
    %c0_i32 = arith.constant 0 : i32
    %c0_i32_0 = arith.constant 0 : i32
    return %arg0, %c0_i32, %arg1 : i32, i32, i32
  }
  func.func @transform_1(%arg0: i32, %arg1: i32) -> (i32, i32, i32) {
    %c0_i32 = arith.constant 0 : i32
    %c0_i32_0 = arith.constant 0 : i32
    %c0_i32_1 = arith.constant 0 : i32
    return %arg0, %c0_i32, %c0_i32_0 : i32, i32, i32
  }
}

</mosaic_0001>

<llo_original>
// kernel: tpu_custom_call.1
$region0: #{tpu_custom_call.1}
  #allocation0 [shape = 'u32[]', space=smem, size = 0x4, offset = 0x4, fixed_abs, tag = 'smem constant byte address 0x4 - core index']
  #allocation1 [shape = 'u32[144,128]{1,0:T(1,128)}', space=vmem, size = 0x12000, scoped, tag = 'internal scratch']
  %s0 = inlined_call_operand.hbm [shape: bf16[2,8,256], index: 0, kind: input, shape index: {}]
  %s1 = inlined_call_operand.vmem [shape: f32[2,8,2], index: 1, kind: output, shape index: {}]
  %s2 = sld [smem:[#allocation0]]
  $region45: #{tpu_custom_call.1} parent=0
    _
  %s4 = ssub.s32 1, %s2
  %s5 = scalar_select 0, %s4, %s2
  $region1: #{tpu_custom_call.1} parent=0
    #allocation2 [shape = 'u8[8192]{0}', space=vmem, size = 0x2000, scoped, tag = 'input window, operand 0']
    #allocation3 [shape = 's32[2]{0}', space=sflag, size = 0x8, scoped, tag = 'scoped memory for tpu_custom_call.1']
    %6 = vsyncpa [#allocation3], 0
    %s7 = scalar_lea.sflag [#allocation3], 1
    %8 = vsyncpa %s7, 0
    loop: start=0, step=1, limit=4
    $region2: #{tpu_custom_call.1} parent=1 // loop_pre_header
      _
    $region3: #{tpu_custom_call.1} parent=1 // loop_header
      %s10 = sphi 0, %s14
      %p11 = scmp.ge.s32.totalorder %s10, 4
      %s17 = sphi 0, %s29
      %s18 = sphi 0, %s25
      %s19 = sphi 0, %s17
      %s20 = sphi 0, %s18
      %s21 = sphi 0, %s19
      %s22 = sphi 0, %s20
      %s34 = sphi 0, %s36
      %s37 = sphi 0, %s34
      %s38 = sphi 0, %s37
      %s54 = sphi 0, %s38
      %s60 = sphi 0, %s62
      %s63 = sphi 0, %s60
      %s64 = sphi 0, %s63
      %s80 = sphi 0, %s64
    $region4: #{tpu_custom_call.1} parent=1 // loop_header_branch
      %13 = sbr.rel (%p11) target = $region8
    $region5: #{tpu_custom_call.1} parent=1 // loop_body
      %s15 = ssub.s32 %s10, 1
      %s16 = ssub.s32 %s10, 2
      %s23 = sadd.s32 1, %s18
      %p24 = scmp.ge.s32.totalorder %s23, 1
      %s25 = scalar_select %p24, 0, %s23
      %s26 = sadd.s32 1, %s17
      %s27 = scalar_select %p24, %s26, %s17
      %p28 = scmp.ge.s32.totalorder %s27, 2
      %s29 = scalar_select %p28, 0, %s27
      %s30 = ssub.s32 %s17, %s29
      %s31 = ssub.s32 %s18, %s25
      %s32 = sor.u32 %s30, %s31
      %p33 = scmp.eq.s32.totalorder %s32, 0
      %s35 = sadd.s32 %s34, 1
      %s36 = scalar_select %p33, %s34, %s35
      %p39 = pneg %p33
      %p40 = scmp.eq.s32.totalorder %s10, 1
      %p41 = por %p39, %p40
      %p42 = scmp.ne.s32.totalorder %s34, %s37
      %p43 = scmp.eq.s32.totalorder %s10, 0
      %p44 = por %p42, %p43
      %p45 = scmp.ne.s32.totalorder %s34, %s37
      %p46 = scmp.eq.s32.totalorder %s15, 1
      %p47 = por %p45, %p46
      %p48 = scmp.ne.s32.totalorder %s37, %s38
      %p49 = scmp.eq.s32.totalorder %s15, 0
      %p50 = por %p48, %p49
      %p51 = scmp.ne.s32.totalorder %s37, %s38
      %p52 = scmp.eq.s32.totalorder %s16, 1
      %p53 = por %p51, %p52
      %p55 = scmp.ne.s32.totalorder %s38, %s54
      %p56 = scmp.eq.s32.totalorder %s16, 0
      %p57 = por %p55, %p56
      %s58 = ssub.s32 %s17, %s29
      %p59 = scmp.eq.s32.totalorder %s58, 0
      %s61 = sadd.s32 %s60, 1
      %s62 = scalar_select %p59, %s60, %s61
      %p65 = pneg %p59
      %p66 = scmp.eq.s32.totalorder %s10, 1
      %p67 = por %p65, %p66
      %p68 = scmp.ne.s32.totalorder %s60, %s63
      %p69 = scmp.eq.s32.totalorder %s10, 0
      %p70 = por %p68, %p69
      %p71 = scmp.ne.s32.totalorder %s60, %s63
      %p72 = scmp.eq.s32.totalorder %s15, 1
      %p73 = por %p71, %p72
      %p74 = scmp.ne.s32.totalorder %s63, %s64
      %p75 = scmp.eq.s32.totalorder %s15, 0
      %p76 = por %p74, %p75
      %p77 = scmp.ne.s32.totalorder %s63, %s64
      %p78 = scmp.eq.s32.totalorder %s16, 1
      %p79 = por %p77, %p78
      %p81 = scmp.ne.s32.totalorder %s64, %s80
      %p82 = scmp.eq.s32.totalorder %s16, 0
      %p83 = por %p81, %p82
      %p84 = scmp.le.s32.totalorder 1, %s10
      %p85 = scmp.lt.s32.totalorder %s10, 3
      %p86 = pnand %p84, %p85
      %p87 = pneg %p86
      // Predicated region
      $region9: #{tpu_custom_call.1} parent=5 // pred_check
        _
      $region10: #{tpu_custom_call.1} parent=5 // pred_check_branch
        %89 = sbr.rel (%p86) target = $region12
      $region11: #{tpu_custom_call.1} parent=5 // pred_region
        %s90 = ssub.s32 %s10, 1
      $region12: #{tpu_custom_call.1} parent=5 // pred_fallthru
        _
      %p91 = scmp.lt.s32.totalorder %s10, 2
      // Predicated region
      $region13: #{tpu_custom_call.1} parent=5 // pred_check
        %p92 = pneg %p91
      $region14: #{tpu_custom_call.1} parent=5 // pred_check_branch
        %94 = sbr.rel (%p92) target = $region16
      $region15: #{tpu_custom_call.1} parent=5 // pred_region
        // Predicated region
        $region17: #{tpu_custom_call.1} parent=15 // pred_check
          %p95 = pneg %p44
        $region18: #{tpu_custom_call.1} parent=15 // pred_check_branch
          %97 = sbr.rel (%p95) target = $region20
        $region19: #{tpu_custom_call.1} parent=15 // pred_region
          %s98 = sand.u32 %s34, 1
          %s99 = scalar_lea.sflag [#allocation3], %s98
          %s100 = sand.u32 %s34, 1
          %s101 = smul.addr %s100, 8
          %s102 = scalar_lea.vmem [#allocation2], %s101
          %s103 = smul.u32 2, %s18
          %s105 = ssub.s32 128, 128
          %106 = vsyncadd %s99, %s105
          %s107 = smul.addr %s17, 2
          %s108 = sadd.s32 %s103, %s107
          %s109 = smul.addr %s108, 64
          %s110 = scalar_lea.hbm %s0, %s109
          %s112 = sshll.u32 %s102, 4
          %s113 = int_to_ptr.vmem [resolvable:$true] %s112
          %115 = dma.hbm_to_vmem [thread:$0]  %s110, 128, %s113, %s99
        $region20: #{tpu_custom_call.1} parent=15 // pred_fallthru
          _
      $region16: #{tpu_custom_call.1} parent=5 // pred_fallthru
        _
      %p116 = scmp.le.s32.totalorder 1, %s10
      %p117 = scmp.lt.s32.totalorder %s10, 3
      %p118 = pnand %p116, %p117
      %p119 = pneg %p118
      // Predicated region
      $region21: #{tpu_custom_call.1} parent=5 // pred_check
        _
      $region22: #{tpu_custom_call.1} parent=5 // pred_check_branch
        %121 = sbr.rel (%p118) target = $region24
      $region23: #{tpu_custom_call.1} parent=5 // pred_region
        %s122 = ssub.s32 %s10, 1
        %s123 = sand.u32 %s37, 1
        %s124 = scalar_lea.sflag [#allocation3], %s123
        %s125 = sand.u32 %s37, 1
        %s126 = smul.addr %s125, 8
        %s127 = scalar_lea.vmem [#allocation2], %s126
        // Predicated region
        $region25: #{tpu_custom_call.1} parent=23 // pred_check
          %p128 = pneg %p50
        $region26: #{tpu_custom_call.1} parent=23 // pred_check_branch
          %130 = sbr.rel (%p128) target = $region28
        $region27: #{tpu_custom_call.1} parent=23 // pred_region
          %131 = dma.done %s124, 128
        $region28: #{tpu_custom_call.1} parent=23 // pred_fallthru
          _
        %s132 = sand.u32 %s37, 1
        %s133 = scalar_lea.sflag [#allocation3], %s132
        %s134 = sand.u32 %s37, 1
        %s135 = smul.addr %s134, 8
        %s136 = scalar_lea.vmem [#allocation2], %s135
        %p137 = pneg %p50
        %p138 = pneg %p47
        %p139 = pneg %p76
        %p140 = pneg %p73
        %p141 = scmp.lt.s32.totalorder %s19, 1
        %s142 = scalar_select %p141, %s19, 1
        %s143 = smul.addr %s142, 8
        %s144 = scalar_lea.vmem %s1, %s143
        %s145 = smul.u32 2, %s20
        %p146 = scmp.lt.s32.totalorder %s19, 1
        %s147 = scalar_select %p146, %s19, 1
        %s148 = smul.addr %s147, 8
        %s149 = scalar_lea.vmem %s1, %s148
        %p150 = scmp.eq.s32.totalorder %s20, 0
        // Predicated region
        $region29: #{tpu_custom_call.1} parent=23 // pred_check
          %p151 = pneg %p150
        $region30: #{tpu_custom_call.1} parent=23 // pred_check_branch
          %153 = sbr.rel (%p151) target = $region32
        $region31: #{tpu_custom_call.1} parent=23 // pred_region
          %vm154 = vcmask 15360
          %155 = vst.msk [vmem:[%s149] sm:$0xff] %vm154, 0.0
        $region32: #{tpu_custom_call.1} parent=23 // pred_fallthru
          _
        %v156 = vld [vmem:[%s127] sm:$0xff]
        %v157 = vunpack.c.l.bf16 %v156
        %v158 = vunpack.c.h.bf16 %v156
        %v159 = vadd.f32 %v157, %v158
        %160 = vadd.xlane.f32.xlu0 %v159
        %v161 = vpop.xlane.xlu0 %160
        %v162 = vmul.f32 %v157, %v157
        %v163 = vmul.f32 %v158, %v158
        %v164 = vadd.f32 %v162, %v163
        %165 = vadd.xlane.f32.xlu0 %v164
        %v166 = vpop.xlane.xlu0 %165
        %v167 = vld [vmem:[%s149] sm:$0xff]
        %vm168 = vcmask 7168
        %v169 = vsel %vm168, %v161, %v166
        %v170 = vadd.f32 %v167, %v169
        %vm171 = vcmask 15360
        %172 = vst.msk [vmem:[%s149] sm:$0xff] %vm171, %v170
        %p173 = scmp.lt.s32.totalorder %s19, 1
        %s174 = scalar_select %p173, %s19, 1
        %s175 = smul.addr %s174, 8
        %s176 = scalar_lea.vmem %s1, %s175
        // Predicated region
        $region33: #{tpu_custom_call.1} parent=23 // pred_check
          %p177 = pneg %p73
        $region34: #{tpu_custom_call.1} parent=23 // pred_check_branch
          %179 = sbr.rel (%p177) target = $region36
        $region35: #{tpu_custom_call.1} parent=23 // pred_region
          _
        $region36: #{tpu_custom_call.1} parent=23 // pred_fallthru
          _
      $region24: #{tpu_custom_call.1} parent=5 // pred_fallthru
        _
      %p180 = scmp.le.s32.totalorder 2, %s10
      // Predicated region
      $region37: #{tpu_custom_call.1} parent=5 // pred_check
        %p181 = pneg %p180
      $region38: #{tpu_custom_call.1} parent=5 // pred_check_branch
        %183 = sbr.rel (%p181) target = $region40
      $region39: #{tpu_custom_call.1} parent=5 // pred_region
        %s184 = ssub.s32 %s10, 2
        // Predicated region
        $region41: #{tpu_custom_call.1} parent=39 // pred_check
          %p185 = pneg %p79
        $region42: #{tpu_custom_call.1} parent=39 // pred_check_branch
          %187 = sbr.rel (%p185) target = $region44
        $region43: #{tpu_custom_call.1} parent=39 // pred_region
          %p188 = scmp.lt.s32.totalorder %s21, 1
          %s189 = scalar_select %p188, %s21, 1
          %s190 = smul.addr %s189, 8
          %s191 = scalar_lea.vmem %s1, %s190
        $region44: #{tpu_custom_call.1} parent=39 // pred_fallthru
          _
      $region40: #{tpu_custom_call.1} parent=5 // pred_fallthru
        _
    $region6: #{tpu_custom_call.1} parent=1 // loop_footer
      %s14 = sadd.s32 1, %s10
    $region7: #{tpu_custom_call.1} parent=1 // loop_footer_branch
      %9 = sbr.rel target = $region3
    $region8: #{tpu_custom_call.1} parent=1 // loop_exit
      _
    %192 = vsyncpa [#allocation3], 1
    %s193 = scalar_lea.sflag [#allocation3], 1
    %194 = vsyncpa %s193, 1

</llo_original>
